<compile_context>
chip_gen: v6e
topology: v6e:2x2x1
jax: 0.10.0
libtpu: 0.0.40
codegen_flags: <defaults>
</compile_context>

<pallas_src>
import jax
import jax.numpy as jnp
from jax.experimental import pallas as pl
from jax.experimental.pallas import tpu as pltpu


LANE = 128


def _round_up(x, m):
    return ((x + m - 1) // m) * m


# ------------------------------------------------------------------ kernels

def _feature_kernel(x_ref, w_ref, o_ref):
    """XW = X @ W for one row block (no bias: bias is applied post-aggregation)."""
    o_ref[...] = jnp.dot(x_ref[...], w_ref[...],
                         preferred_element_type=jnp.float32).astype(o_ref.dtype)


def _make_agg_kernel(apply_relu: bool, fuse_next: bool, compute_dtype):
    """A_hat row-block aggregation with K-axis accumulation.

    k == 0:        acc = broadcast(bias)            (bias folded into init)
    every k:       acc += A[i, k] @ XW[k]           (bf16 MXU, f32 accumulation)
    last k:        h = relu(acc) if apply_relu
                   out = h @ W_next (fused next-layer feature transform) or h itself
    """
    if fuse_next:
        def kernel(a_ref, xw_ref, b_ref, wn_ref, o_ref, acc_ref):
            k = pl.program_id(1)

            @pl.when(k == 0)
            def _init():
                acc_ref[...] = jnp.broadcast_to(b_ref[...], acc_ref.shape)

            acc_ref[...] += jnp.dot(a_ref[...], xw_ref[...],
                                    preferred_element_type=jnp.float32)

            @pl.when(k == pl.num_programs(1) - 1)
            def _finalize():
                h = acc_ref[...]
                if apply_relu:
                    h = jnp.maximum(h, 0.0)
                o_ref[...] = jnp.dot(h.astype(compute_dtype), wn_ref[...],
                                     preferred_element_type=jnp.float32
                                     ).astype(o_ref.dtype)
        return kernel

    def kernel(a_ref, xw_ref, b_ref, o_ref, acc_ref):
        k = pl.program_id(1)

        @pl.when(k == 0)
        def _init():
            acc_ref[...] = jnp.broadcast_to(b_ref[...], acc_ref.shape)

        acc_ref[...] += jnp.dot(a_ref[...], xw_ref[...],
                                preferred_element_type=jnp.float32)

        @pl.when(k == pl.num_programs(1) - 1)
        def _finalize():
            h = acc_ref[...]
            if apply_relu:
                h = jnp.maximum(h, 0.0)
            o_ref[...] = h.astype(o_ref.dtype)
    return kernel


# ------------------------------------------------------------------ Pallas wrappers

def _vmem_limit(bm, bk, c, cn, in_b, out_b):
    """Explicit scoped-VMEM budget: double-buffered tiles + scratch + weights + headroom."""
    resident = (2 * bm * bk * in_b          # double-buffered A_hat tile
                + 2 * bk * c * in_b         # double-buffered XW K-slab
                + 2 * bm * cn * out_b       # double-buffered output tile
                + bm * c * 4                # f32 accumulator scratch
                + c * cn * in_b + cn * 4)   # resident next-layer weights + bias
    return int(min(max(2 * resident + (4 << 20), 16 << 20), 64 << 20))


def _gcn_layer(a_p, xw, b, w_next, *, apply_relu, bm, bk, out_dtype, compute_dtype):
    """One GCNConv layer: A_hat @ XW + b (+relu, + fused next feature transform)."""
    np_ = a_p.shape[0]
    c = xw.shape[1]
    fuse = w_next is not None
    cn = w_next.shape[1] if fuse else c
    gi, gk = np_ // bm, np_ // bk
    in_b = jnp.dtype(compute_dtype).itemsize
    out_b = jnp.dtype(out_dtype).itemsize

    in_specs = [
        pl.BlockSpec((bm, bk), lambda i, k: (i, k)),   # A_hat tile, streamed from HBM
        pl.BlockSpec((bk, c), lambda i, k: (k, 0)),    # XW K-slab
        pl.BlockSpec((1, c), lambda i, k: (0, 0)),     # bias (tiny, revisited)
    ]
    args = [a_p, xw, b]
    if fuse:
        in_specs.append(pl.BlockSpec((c, cn), lambda i, k: (0, 0)))  # next-layer weights
        args.append(w_next)

    return pl.pallas_call(
        _make_agg_kernel(apply_relu, fuse, compute_dtype),
        out_shape=jax.ShapeDtypeStruct((np_, cn), out_dtype),
        grid=(gi, gk),
        in_specs=in_specs,
        out_specs=pl.BlockSpec((bm, cn), lambda i, k: (i, 0)),
        scratch_shapes=[pltpu.VMEM((bm, c), jnp.float32)],
        compiler_params=pltpu.CompilerParams(
            dimension_semantics=("parallel", "arbitrary"),
            vmem_limit_bytes=_vmem_limit(bm, bk, c, cn, in_b, out_b)),
    )(*args)


def gcn3_forward_pallas(a_hat, x, params, *, compute_dtype=jnp.bfloat16):
    """Forward pass: A@(relu(A@(relu(A@(X W1)+b1) W2)+b2) W3)+b3 (eval mode)."""
    (w1, b1), (w2, b2), (w3, b3) = params
    n, c_in = x.shape
    c1, c2, c_out = w1.shape[1], w2.shape[1], w3.shape[1]
    c3p = _round_up(c_out, LANE)           # lane-dense (128-padded) classifier width

    # Node-axis tiling: big tiles (>=512) near the HBM roofline at scale; one tile when
    # small.  Zero-padding extra rows/cols of A_hat / X keeps the math exact.
    blk = 512 if n > 1024 else 128
    np_ = _round_up(n, blk)
    bm = bk = blk

    cd = compute_dtype
    a_p = jnp.zeros((np_, np_), cd).at[:n, :n].set(a_hat.astype(cd))
    x_p = jnp.zeros((np_, c_in), cd).at[:n, :].set(x.astype(cd))
    w1c, w2c = w1.astype(cd), w2.astype(cd)
    w3p = jnp.zeros((c2, c3p), cd).at[:, :c_out].set(w3.astype(cd))
    b1f = b1.reshape(1, c1).astype(jnp.float32)
    b2f = b2.reshape(1, c2).astype(jnp.float32)
    b3p = jnp.zeros((1, c3p), jnp.float32).at[:, :c_out].set(
        b3.reshape(1, c_out).astype(jnp.float32))
    in_b = jnp.dtype(cd).itemsize

    # layer-1 feature transform: XW1 = X @ W1 (row-block parallel, bf16 out)
    xw1 = pl.pallas_call(
        _feature_kernel,
        out_shape=jax.ShapeDtypeStruct((np_, c1), cd),
        grid=(np_ // bm,),
        in_specs=[pl.BlockSpec((bm, c_in), lambda i: (i, 0)),
                  pl.BlockSpec((c_in, c1), lambda i: (0, 0))],
        out_specs=pl.BlockSpec((bm, c1), lambda i: (i, 0)),
        compiler_params=pltpu.CompilerParams(
            dimension_semantics=("parallel",),
            vmem_limit_bytes=_vmem_limit(bm, c_in, c1, c1, in_b, in_b)),
    )(x_p, w1c)

    # layer 1: aggregate + bias + relu, fused with layer-2 feature transform -> XW2
    xw2 = _gcn_layer(a_p, xw1, b1f, w2c, apply_relu=True,
                     bm=bm, bk=bk, out_dtype=cd, compute_dtype=cd)
    # layer 2: aggregate + bias + relu, fused with layer-3 feature transform -> XW3 (128-wide)
    xw3 = _gcn_layer(a_p, xw2, b2f, w3p, apply_relu=True,
                     bm=bm, bk=bk, out_dtype=cd, compute_dtype=cd)
    # layer 3: aggregate + bias (logits, no relu); lane-dense f32 store
    out = _gcn_layer(a_p, xw3, b3p, None, apply_relu=False,
                     bm=bm, bk=bk, out_dtype=jnp.float32, compute_dtype=cd)

    return out[:n, :c_out]


# ------------------------------------------------------------------ plain-JAX glue

def build_normalized_adjacency(edge_index, edge_weight, num_nodes):
    """Dense A_hat matching PyG gcn_norm(add_self_loops=True, flow='source_to_target').

    A_hat[dst, src] = deg^{-1/2}[src] * w * deg^{-1/2}[dst],  deg = scatter_add(w, dst).
    Scatter-add has no clean Pallas equivalent; done here in plain JAX.
    """
    src = edge_index[0]
    dst = edge_index[1]
    if edge_weight is None:
        edge_weight = jnp.ones(src.shape[0], dtype=jnp.float32)

    loop = jnp.arange(num_nodes, dtype=src.dtype)
    src = jnp.concatenate([src, loop])
    dst = jnp.concatenate([dst, loop])
    w = jnp.concatenate([edge_weight, jnp.ones(num_nodes, dtype=jnp.float32)])

    deg = jnp.zeros((num_nodes,), jnp.float32).at[dst].add(w)
    deg_inv_sqrt = jnp.where(deg > 0, 1.0 / jnp.sqrt(deg), 0.0)
    norm = deg_inv_sqrt[src] * w * deg_inv_sqrt[dst]

    a_hat = jnp.zeros((num_nodes, num_nodes), jnp.float32).at[dst, src].add(norm)
    return a_hat


def init_params(key, in_channels, hidden1=64, hidden2=32, out_channels=4):
    """Deterministic glorot-uniform weights (in, out) + zero biases (1, out)."""
    def glorot(k, fan_in, fan_out):
        lim = jnp.sqrt(6.0 / (fan_in + fan_out))
        return jax.random.uniform(k, (fan_in, fan_out), jnp.float32, -lim, lim)

    k1, k2, k3 = jax.random.split(key, 3)
    dims = [(in_channels, hidden1), (hidden1, hidden2), (hidden2, out_channels)]
    params = []
    for k, (fi, fo) in zip((k1, k2, k3), dims):
        params.append((glorot(k, fi, fo), jnp.zeros((1, fo), jnp.float32)))
    return params


def gcn3_reference(a_hat, x, params):
    """Pure-JAX f32 reference of the same forward pass (for sanity checking)."""
    (w1, b1), (w2, b2), (w3, b3) = params
    h = jnp.maximum(a_hat @ (x @ w1) + b1, 0.0)
    h = jnp.maximum(a_hat @ (h @ w2) + b2, 0.0)
    return a_hat @ (h @ w3) + b3


# ------------------------------------------------------------------ demo / test

if __name__ == "__main__":
    key = jax.random.PRNGKey(0)
    k_x, k_ei, k_ew, k_p = jax.random.split(key, 4)

    num_nodes = 16
    in_channels = 8
    num_edges = 40

    x = jax.random.normal(k_x, (num_nodes, in_channels), jnp.float32)
    edge_index = jax.random.randint(k_ei, (2, num_edges), 0, num_nodes, jnp.int32)
    edge_weight = jax.random.uniform(k_ew, (num_edges,), jnp.float32, 0.1, 1.0)

    params = init_params(k_p, in_channels, hidden1=64, hidden2=32, out_channels=4)
    a_hat = build_normalized_adjacency(edge_index, edge_weight, num_nodes)

    out = gcn3_forward_pallas(a_hat, x, params)
    out = jax.block_until_ready(out)

    ref = gcn3_reference(a_hat, x, params)
    assert out.shape == (num_nodes, 4)
    # bf16 MXU inputs (f32 accumulation) -> loosened tolerance vs the f32 reference.
    assert jnp.allclose(out, ref, atol=3e-2, rtol=3e-2), float(jnp.max(jnp.abs(out - ref)))

    print("KERNEL_OK")
</pallas_src>

<mosaic_0001>
module attributes {stable_mosaic.version = 11 : i64} {
  func.func @_feature_kernel(%arg0: i32, %arg1: memref<128x8xbf16, #tpu.memory_space<vmem>>, %arg2: memref<8x64xbf16, #tpu.memory_space<vmem>>, %arg3: memref<128x64xbf16, #tpu.memory_space<vmem>>) attributes {dimension_semantics = [#tpu.dimension_semantics<parallel>], iteration_bounds = array<i64: 1>, scalar_prefetch = 0 : i64, scratch_operands = 0 : i64, tpu.core_type = #tpu.core_type<tc>, window_params = [{transform_indices = @transform_0, window_bounds = array<i64: 128, 8>}, {pipeline_mode = #tpu.pipeline_mode<synchronous>, transform_indices = @transform_1, window_bounds = array<i64: 8, 64>}, {transform_indices = @transform_2, window_bounds = array<i64: 128, 64>}]} {
    %c0 = arith.constant 0 : index
    %c0_0 = arith.constant 0 : index
    %0 = vector.load %arg1[%c0, %c0_0] : memref<128x8xbf16, #tpu.memory_space<vmem>>, vector<128x8xbf16>
    %c0_1 = arith.constant 0 : index
    %c0_2 = arith.constant 0 : index
    %1 = vector.load %arg2[%c0_1, %c0_2] : memref<8x64xbf16, #tpu.memory_space<vmem>>, vector<8x64xbf16>
    %cst = arith.constant dense<0.000000e+00> : vector<128x64xf32>
    %2 = tpu.matmul %0, %1, %cst {dimension_numbers = #tpu.dot_dimension_numbers<[1], [0], [0], [1], [0, 0, 1, 1], [], []>} : vector<128x8xbf16>, vector<8x64xbf16>, vector<128x64xf32> -> vector<128x64xf32>
    %3 = arith.truncf %2 : vector<128x64xf32> to vector<128x64xbf16>
    %c0_3 = arith.constant 0 : index
    %c0_4 = arith.constant 0 : index
    %4 = vector.load %arg3[%c0_3, %c0_4] : memref<128x64xbf16, #tpu.memory_space<vmem>>, vector<128x64xbf16>
    tpu.vector_store %arg3[%c0_3, %c0_4], %3 {strides = array<i32>} : memref<128x64xbf16, #tpu.memory_space<vmem>>, vector<128x64xbf16>,
    return
  }
  func.func @transform_0(%arg0: i32) -> (i32, i32) {
    %c0_i32 = arith.constant 0 : i32
    %c0_i32_0 = arith.constant 0 : i32
    return %arg0, %c0_i32 : i32, i32
  }
  func.func @transform_1(%arg0: i32) -> (i32, i32) {
    %c0_i32 = arith.constant 0 : i32
    %c0_i32_0 = arith.constant 0 : i32
    %c0_i32_1 = arith.constant 0 : i32
    return %c0_i32, %c0_i32_0 : i32, i32
  }
  func.func @transform_2(%arg0: i32) -> (i32, i32) {
    %c0_i32 = arith.constant 0 : i32
    %c0_i32_0 = arith.constant 0 : i32
    return %arg0, %c0_i32 : i32, i32
  }
}

</mosaic_0001>

<llo_original>
// kernel: tpu_custom_call.1
$region0: #{tpu_custom_call.1}
  #allocation0 [shape = 'u32[]', space=smem, size = 0x4, offset = 0x4, fixed_abs, tag = 'smem constant byte address 0x4 - core index']
  #allocation1 [shape = 'u32[144,128]{1,0:T(1,128)}', space=vmem, size = 0x12000, scoped, tag = 'internal scratch']
  %s0 = inlined_call_operand.vmem [shape: bf16[128,8], index: 0, kind: input, shape index: {}]
  %s1 = inlined_call_operand.vmem [shape: bf16[8,64], index: 1, kind: input, shape index: {}]
  %s2 = inlined_call_operand.vmem [shape: bf16[128,64], index: 2, kind: output, shape index: {}]
  %s3 = sld [smem:[#allocation0]]
  $region18: #{tpu_custom_call.1} parent=0
    _
  %s5 = ssub.s32 1, %s3
  %s6 = scalar_select 0, %s5, %s3
  // Predicated region
  $region2: #{tpu_custom_call.1} parent=0 // pred_check
    _
  $region3: #{tpu_custom_call.1} parent=0 // pred_check_branch
    %8 = sbr.rel (0) target = $region5
  $region4: #{tpu_custom_call.1} parent=0 // pred_region
    _
  $region5: #{tpu_custom_call.1} parent=0 // pred_fallthru
    _
  // Predicated region
  $region6: #{tpu_custom_call.1} parent=0 // pred_check
    _
  $region7: #{tpu_custom_call.1} parent=0 // pred_check_branch
    %10 = sbr.rel (0) target = $region9
  $region8: #{tpu_custom_call.1} parent=0 // pred_region
    _
  $region9: #{tpu_custom_call.1} parent=0 // pred_fallthru
    _
  %v12 = vld [vmem:[%s0] sm:$0xf]
  %v13 = vld [vmem:[%s0 + $0x4] sm:$0xf]
  %v14 = vld [vmem:[%s0 + $0x8] sm:$0xf]
  %v15 = vld [vmem:[%s0 + $0xc] sm:$0xf]
  %v16 = vld [vmem:[%s0 + $0x10] sm:$0xf]
  %v17 = vld [vmem:[%s0 + $0x14] sm:$0xf]
  %v18 = vld [vmem:[%s0 + $0x18] sm:$0xf]
  %v19 = vld [vmem:[%s0 + $0x1c] sm:$0xf]
  %v20 = vld [vmem:[%s0 + $0x20] sm:$0xf]
  %v21 = vld [vmem:[%s0 + $0x24] sm:$0xf]
  %v22 = vld [vmem:[%s0 + $0x28] sm:$0xf]
  %v23 = vld [vmem:[%s0 + $0x2c] sm:$0xf]
  %v24 = vld [vmem:[%s0 + $0x30] sm:$0xf]
  %v25 = vld [vmem:[%s0 + $0x34] sm:$0xf]
  %v26 = vld [vmem:[%s0 + $0x38] sm:$0xf]
  %v27 = vld [vmem:[%s0 + $0x3c] sm:$0xf]
  %v28 = vld [vmem:[%s1] sm:$0xf]
  %v45 = vunpack.c.l.b16 %v12
  %v46 = vunpack.c.l.b16 %v13
  %v47 = vunpack.c.l.b16 %v14
  %v48 = vunpack.c.l.b16 %v15
  %v49 = vunpack.c.l.b16 %v16
  %v50 = vunpack.c.l.b16 %v17
  %v51 = vunpack.c.l.b16 %v18
  %v52 = vunpack.c.l.b16 %v19
  %v53 = vunpack.c.l.b16 %v20
  %v54 = vunpack.c.l.b16 %v21
  %v55 = vunpack.c.l.b16 %v22
  %v56 = vunpack.c.l.b16 %v23
  %v57 = vunpack.c.l.b16 %v24
  %v58 = vunpack.c.l.b16 %v25
  %v59 = vunpack.c.l.b16 %v26
  %v60 = vunpack.c.l.b16 %v27
  %v61 = vpack.c.b16 %v46, %v45
  %v62 = vpack.c.b16 %v48, %v47
  %v63 = vpack.c.b16 %v50, %v49
  %v64 = vpack.c.b16 %v52, %v51
  %v65 = vpack.c.b16 %v54, %v53
  %v66 = vpack.c.b16 %v56, %v55
  %v67 = vpack.c.b16 %v58, %v57
  %v68 = vpack.c.b16 %v60, %v59
  %vm69 = vcmask 64512
  %v71 = vsel %vm69, %v61, 0
  %v74 = vsel %vm69, %v62, 0
  %v77 = vsel %vm69, %v63, 0
  %v80 = vsel %vm69, %v64, 0
  %v83 = vsel %vm69, %v65, 0
  %v86 = vsel %vm69, %v66, 0
  %v89 = vsel %vm69, %v67, 0
  %v92 = vsel %vm69, %v68, 0
  %vm94 = vcmask 1043456
  %v96 = vsel %vm94, %v28, 0
  %98 = vmatprep.subr.bf16.mxu0 0
  %99 = vmatpush1.bf16.msra.mxu0 0
  %100 = vmatprep.subr.bf16.mxu0 0
  %101 = vmatpush1.bf16.msra.mxu0 0
  %102 = vmatprep.subr.bf16.mxu0 0
  %103 = vmatpush1.bf16.msra.mxu0 0
  %104 = vmatprep.subr.bf16.mxu0 0
  %105 = vmatpush1.bf16.msra.mxu0 0
  %106 = vmatprep.subr.bf16.mxu0 0
  %107 = vmatpush1.bf16.msra.mxu0 0
  %108 = vmatprep.subr.bf16.mxu0 0
  %109 = vmatpush1.bf16.msra.mxu0 0
  %110 = vmatprep.subr.bf16.mxu0 0
  %111 = vmatpush1.bf16.msra.mxu0 0
  %112 = vmatprep.subr.bf16.mxu0 0
  %113 = vmatpush1.bf16.msra.mxu0 %v96
  %114 = vmatprep.subr.bf16.mxu0 0
  %115 = vmatpush2.bf16.msra.mxu0 0
  %116 = vmatprep.subr.bf16.mxu0 0
  %117 = vmatpush2.bf16.msra.mxu0 0
  %118 = vmatprep.subr.bf16.mxu0 0
  %119 = vmatpush2.bf16.msra.mxu0 0
  %120 = vmatprep.subr.bf16.mxu0 0
  %121 = vmatpush2.bf16.msra.mxu0 0
  %122 = vmatprep.subr.bf16.mxu0 0
  %123 = vmatpush2.bf16.msra.mxu0 0
  %124 = vmatprep.subr.bf16.mxu0 0
  %125 = vmatpush2.bf16.msra.mxu0 0
  %126 = vmatprep.subr.bf16.mxu0 0
  %127 = vmatpush2.bf16.msra.mxu0 0
  %128 = vmatprep.subr.bf16.mxu0 0
  %129 = vmatpush2.bf16.msra.mxu0 0
  %130 = vmatprep.mubr.bf16.mxu0 0
  %131 = vmatmul.mubr.bf16.gmra.mxu0 %v71
  %v132 = vpop.f32.mrf.mxu0
  %v133 = vadd.f32 0.0, %v132
  %v134 = vpop.f32.mrf.mxu0
  %v135 = vpop.f32.mrf.mxu0
  %v136 = vadd.f32 0.0, %v135
  %v137 = vpop.f32.mrf.mxu0
  %138 = vmatprep.mubr.bf16.mxu0 0
  %139 = vmatmul.mubr.bf16.gmra.mxu0 %v74
  %v140 = vpop.f32.mrf.mxu0
  %v141 = vadd.f32 0.0, %v140
  %v142 = vpop.f32.mrf.mxu0
  %v143 = vpop.f32.mrf.mxu0
  %v144 = vadd.f32 0.0, %v143
  %v145 = vpop.f32.mrf.mxu0
  %146 = vmatprep.mubr.bf16.mxu0 0
  %147 = vmatmul.mubr.bf16.gmra.mxu0 %v77
  %v148 = vpop.f32.mrf.mxu0
  %v149 = vadd.f32 0.0, %v148
  %v150 = vpop.f32.mrf.mxu0
  %v151 = vpop.f32.mrf.mxu0
  %v152 = vadd.f32 0.0, %v151
  %v153 = vpop.f32.mrf.mxu0
  %154 = vmatprep.mubr.bf16.mxu0 0
  %155 = vmatmul.mubr.bf16.gmra.mxu0 %v80
  %v156 = vpop.f32.mrf.mxu0
  %v157 = vadd.f32 0.0, %v156
  %v158 = vpop.f32.mrf.mxu0
  %v159 = vpop.f32.mrf.mxu0
  %v160 = vadd.f32 0.0, %v159
  %v161 = vpop.f32.mrf.mxu0
  %162 = vmatprep.mubr.bf16.mxu0 0
  %163 = vmatmul.mubr.bf16.gmra.mxu0 %v83
  %v164 = vpop.f32.mrf.mxu0
  %v165 = vadd.f32 0.0, %v164
  %v166 = vpop.f32.mrf.mxu0
  %v167 = vpop.f32.mrf.mxu0
  %v168 = vadd.f32 0.0, %v167
  %v169 = vpop.f32.mrf.mxu0
  %170 = vmatprep.mubr.bf16.mxu0 0
  %171 = vmatmul.mubr.bf16.gmra.mxu0 %v86
  %v172 = vpop.f32.mrf.mxu0
  %v173 = vadd.f32 0.0, %v172
  %v174 = vpop.f32.mrf.mxu0
  %v175 = vpop.f32.mrf.mxu0
  %v176 = vadd.f32 0.0, %v175
  %v177 = vpop.f32.mrf.mxu0
  %178 = vmatprep.mubr.bf16.mxu0 0
  %179 = vmatmul.mubr.bf16.gmra.mxu0 %v89
  %v180 = vpop.f32.mrf.mxu0
  %v181 = vadd.f32 0.0, %v180
  %v182 = vpop.f32.mrf.mxu0
  %v183 = vpop.f32.mrf.mxu0
  %v184 = vadd.f32 0.0, %v183
  %v185 = vpop.f32.mrf.mxu0
  %186 = vmatprep.mubr.bf16.mxu0 0
  %187 = vmatmul.mubr.bf16.gmra.mxu0 %v92
  %v188 = vpop.f32.mrf.mxu0
  %v189 = vadd.f32 0.0, %v188
  %v190 = vpop.f32.mrf.mxu0
  %v191 = vpop.f32.mrf.mxu0
  %v192 = vadd.f32 0.0, %v191
  %v193 = vpop.f32.mrf.mxu0
  %194 = vdwg.mxu0
  %v195 = vpack.c.bf16 %v136, %v133
  %v196 = vpack.c.bf16 %v144, %v141
  %v197 = vpack.c.bf16 %v152, %v149
  %v198 = vpack.c.bf16 %v160, %v157
  %v199 = vpack.c.bf16 %v168, %v165
  %v200 = vpack.c.bf16 %v176, %v173
  %v201 = vpack.c.bf16 %v184, %v181
  %v202 = vpack.c.bf16 %v192, %v189
  %v211 = vunpack.c.l.b16 %v195
  %v212 = vunpack.c.h.b16 %v195
  %v213 = vunpack.c.l.b16 %v196
  %v214 = vunpack.c.h.b16 %v196
  %v215 = vunpack.c.l.b16 %v197
  %v216 = vunpack.c.h.b16 %v197
  %v217 = vunpack.c.l.b16 %v198
  %v218 = vunpack.c.h.b16 %v198
  %v219 = vunpack.c.l.b16 %v199
  %v220 = vunpack.c.h.b16 %v199
  %v221 = vunpack.c.l.b16 %v200
  %v222 = vunpack.c.h.b16 %v200
  %v223 = vunpack.c.l.b16 %v201
  %v224 = vunpack.c.h.b16 %v201
  %v225 = vunpack.c.l.b16 %v202
  %v226 = vunpack.c.h.b16 %v202
  %v227 = vpack.c.b16 %v211, %v211
  %v228 = vpack.c.b16 %v212, %v212
  %v229 = vpack.c.b16 %v213, %v213
  %v230 = vpack.c.b16 %v214, %v214
  %v231 = vpack.c.b16 %v215, %v215
  %v232 = vpack.c.b16 %v216, %v216
  %v233 = vpack.c.b16 %v217, %v217
  %v234 = vpack.c.b16 %v218, %v218
  %v235 = vpack.c.b16 %v219, %v219
  %v236 = vpack.c.b16 %v220, %v220
  %v237 = vpack.c.b16 %v221, %v221
  %v238 = vpack.c.b16 %v222, %v222
  %v239 = vpack.c.b16 %v223, %v223
  %v240 = vpack.c.b16 %v224, %v224
  %v241 = vpack.c.b16 %v225, %v225
  %v242 = vpack.c.b16 %v226, %v226
  %vm259 = vcmask 519168
  %260 = vst.msk [vmem:[%s2] sm:$0xf] %vm259, %v227
  %261 = vst.msk [vmem:[%s2 + $0x4] sm:$0xf] %vm259, %v228
  %262 = vst.msk [vmem:[%s2 + $0x8] sm:$0xf] %vm259, %v229
  %263 = vst.msk [vmem:[%s2 + $0xc] sm:$0xf] %vm259, %v230
  %264 = vst.msk [vmem:[%s2 + $0x10] sm:$0xf] %vm259, %v231
  %265 = vst.msk [vmem:[%s2 + $0x14] sm:$0xf] %vm259, %v232
  %266 = vst.msk [vmem:[%s2 + $0x18] sm:$0xf] %vm259, %v233
  %267 = vst.msk [vmem:[%s2 + $0x1c] sm:$0xf] %vm259, %v234
  %268 = vst.msk [vmem:[%s2 + $0x20] sm:$0xf] %vm259, %v235
  %269 = vst.msk [vmem:[%s2 + $0x24] sm:$0xf] %vm259, %v236
  %270 = vst.msk [vmem:[%s2 + $0x28] sm:$0xf] %vm259, %v237
  %271 = vst.msk [vmem:[%s2 + $0x2c] sm:$0xf] %vm259, %v238
  %272 = vst.msk [vmem:[%s2 + $0x30] sm:$0xf] %vm259, %v239
  %273 = vst.msk [vmem:[%s2 + $0x34] sm:$0xf] %vm259, %v240
  %274 = vst.msk [vmem:[%s2 + $0x38] sm:$0xf] %vm259, %v241
  %275 = vst.msk [vmem:[%s2 + $0x3c] sm:$0xf] %vm259, %v242
  // Predicated region
  $region10: #{tpu_custom_call.1} parent=0 // pred_check
    _
  $region11: #{tpu_custom_call.1} parent=0 // pred_check_branch
    %277 = sbr.rel (0) target = $region13
  $region12: #{tpu_custom_call.1} parent=0 // pred_region
    _
  $region13: #{tpu_custom_call.1} parent=0 // pred_fallthru
    _
  // Predicated region
  $region14: #{tpu_custom_call.1} parent=0 // pred_check
    _
  $region15: #{tpu_custom_call.1} parent=0 // pred_check_branch
    %279 = sbr.rel (0) target = $region17
  $region16: #{tpu_custom_call.1} parent=0 // pred_region
    _
  $region17: #{tpu_custom_call.1} parent=0 // pred_fallthru
    _

</llo_original>
